<compile_context>
chip_gen: v7x
topology: tpu7x:2x2x1
jax: 0.10.0
libtpu: 0.0.40
codegen_flags: <defaults>
</compile_context>

<pallas_src>
import jax
import jax.numpy as jnp
from jax.experimental import pallas as pl
from jax.experimental.pallas import tpu as pltpu


def _make_cross_stitch_kernel(num_tasks):
    T = num_tasks

    def kernel(*refs):
        w_ref = refs[0]                 # (T, T, C, 1)  resident weights
        x_refs = refs[1:1 + T]          # each (1, C, L_tile)
        o_refs = refs[1 + T:1 + 2 * T]  # each (1, C, L_tile)

        # Load each source-task tile exactly once; accumulate in f32.
        xs = [x_refs[j][0].astype(jnp.float32) for j in range(T)]  # (C, L_tile)
        w = w_ref[...]                                             # (T, T, C, 1)

        for i in range(T):              # static unroll over output tasks
            acc = w[i, 0] * xs[0]       # (C,1) lane-broadcast * (C, L_tile)
            for j in range(1, T):
                acc = acc + w[i, j] * xs[j]
            o_refs[i][0] = acc.astype(o_refs[i].dtype)

    return kernel


def _pick_l_tile(l_pad, num_tasks, num_channels, itemsize):
    """Largest multiple-of-128 tile dividing l_pad, under a conservative VMEM budget."""
    budget = 8 * 1024 * 1024  # fits v5e's 16 MiB default scoped VMEM with headroom
    # double-buffered: T input blocks + T output blocks per grid step
    bytes_per_lane = 4 * num_tasks * num_channels * itemsize
    max_lanes = max(128, (budget // bytes_per_lane) // 128 * 128)
    target = min(2048, max_lanes)
    if l_pad <= target:
        return l_pad
    best = 128
    t = 128
    while t <= target:
        if l_pad % t == 0:
            best = t
        t += 128
    return best


def cross_stitch_pallas(task_xs, w):
    """task_xs: list of T arrays (N, C, L); w: (T, T, C). Returns tuple of T arrays."""
    T = len(task_xs)
    N, C, L = task_xs[0].shape
    dtype = task_xs[0].dtype

    # Pad the lane axis to a multiple of 128 (lane-dense stores; (8,128) rule).
    L_pad = ((L + 127) // 128) * 128
    if L_pad != L:
        task_xs = [jnp.pad(x, ((0, 0), (0, 0), (0, L_pad - L))) for x in task_xs]

    L_tile = _pick_l_tile(L_pad, T, C, jnp.dtype(dtype).itemsize)
    grid = (N, L_pad // L_tile)

    # Channels on the sublane axis, trailing 1 lane -> in-kernel lane broadcast.
    w4 = w.astype(jnp.float32)[..., None]                       # (T, T, C, 1)

    x_spec = pl.BlockSpec((1, C, L_tile), lambda n, l: (n, 0, l))
    o_spec = pl.BlockSpec((1, C, L_tile), lambda n, l: (n, 0, l))
    # Constant block index -> fetched once and kept resident across the grid.
    w_spec = pl.BlockSpec((T, T, C, 1), lambda n, l: (0, 0, 0, 0))

    outs = pl.pallas_call(
        _make_cross_stitch_kernel(T),
        out_shape=tuple(
            jax.ShapeDtypeStruct((N, C, L_pad), dtype) for _ in range(T)
        ),
        grid_spec=pltpu.PrefetchScalarGridSpec(
            num_scalar_prefetch=0,
            grid=grid,
            in_specs=[w_spec] + [x_spec] * T,
            out_specs=tuple(o_spec for _ in range(T)),
        ),
        compiler_params=pltpu.CompilerParams(
            dimension_semantics=("parallel", "parallel"),
        ),
    )(w4, *task_xs)

    if L_pad != L:
        outs = tuple(o[:, :, :L] for o in outs)
    return outs


@jax.jit
def _cross_stitch_jit(task_xs, w):
    return cross_stitch_pallas(task_xs, w)


def make_cross_stitch_weights(num_tasks, num_channels, alpha, beta):
    """alpha on the diagonal (same task), beta off-diagonal, per channel."""
    eye = jnp.eye(num_tasks, dtype=jnp.float32)                 # (T, T)
    w_tt = eye * alpha + (1.0 - eye) * beta                     # (T, T)
    return jnp.broadcast_to(w_tt[:, :, None], (num_tasks, num_tasks, num_channels))


def cross_stitch_unit(task_features, alpha=0.9, beta=0.1):
    """task_features: dict {task: (N, C, L) array}. Returns same-structure dict."""
    tasks = list(task_features.keys())
    xs = [task_features[t] for t in tasks]
    T = len(tasks)
    C = xs[0].shape[1]
    w = make_cross_stitch_weights(T, C, alpha, beta)            # (T, T, C)
    outs = _cross_stitch_jit(xs, w)
    return {t: outs[i] for i, t in enumerate(tasks)}


if __name__ == "__main__":
    key = jax.random.PRNGKey(0)
    tasks = ["seg", "depth"]
    N, C, H, W = 2, 4, 16, 16
    L = H * W  # flattened spatial on the lane axis (PyTorch forward implies NCL)

    keys = jax.random.split(key, len(tasks))
    task_features = {
        t: jax.random.normal(k, (N, C, L), dtype=jnp.float32)
        for t, k in zip(tasks, keys)
    }

    alpha, beta = 0.9, 0.1
    out = cross_stitch_unit(task_features, alpha=alpha, beta=beta)
    out = jax.tree_util.tree_map(jax.block_until_ready, out)

    # Pure-JAX reference check (same math as the PyTorch stack + sum path).
    w = make_cross_stitch_weights(len(tasks), C, alpha, beta)
    for i, t_i in enumerate(tasks):
        ref = sum(
            w[i, j][None, :, None] * task_features[t_j]
            for j, t_j in enumerate(tasks)
        )
        assert jnp.allclose(out[t_i], ref, atol=1e-5, rtol=1e-5), f"mismatch for {t_i}"
        assert out[t_i].shape == (N, C, L)
        assert out[t_i].dtype == jnp.float32

    print("KERNEL_OK")
</pallas_src>

<mosaic_0001>
module attributes {stable_mosaic.version = 11 : i64} {
  func.func @kernel(%arg0: i32, %arg1: i32, %arg2: memref<2x2x4x1xf32, #tpu.memory_space<vmem>>, %arg3: memref<1x4x256xf32, #tpu.memory_space<vmem>>, %arg4: memref<1x4x256xf32, #tpu.memory_space<vmem>>, %arg5: memref<1x4x256xf32, #tpu.memory_space<vmem>>, %arg6: memref<1x4x256xf32, #tpu.memory_space<vmem>>) attributes {dimension_semantics = [#tpu.dimension_semantics<parallel>, #tpu.dimension_semantics<parallel>], iteration_bounds = array<i64: 2, 1>, scalar_prefetch = 0 : i64, scratch_operands = 0 : i64, tpu.core_type = #tpu.core_type<tc>, window_params = [{pipeline_mode = #tpu.pipeline_mode<synchronous>, transform_indices = @transform_0, window_bounds = array<i64: 2, 2, 4, 1>}, {transform_indices = @transform_1, window_bounds = array<i64: 1, 4, 256>}, {transform_indices = @transform_2, window_bounds = array<i64: 1, 4, 256>}, {transform_indices = @transform_3, window_bounds = array<i64: 1, 4, 256>}, {transform_indices = @transform_4, window_bounds = array<i64: 1, 4, 256>}]} {
    %c0 = arith.constant 0 : index
    %c0_0 = arith.constant 0 : index
    %c0_1 = arith.constant 0 : index
    %0 = vector.load %arg3[%c0, %c0_0, %c0_1] : memref<1x4x256xf32, #tpu.memory_space<vmem>>, vector<1x4x256xf32>
    %1 = vector.shape_cast %0 : vector<1x4x256xf32> to vector<4x256xf32>
    %c0_2 = arith.constant 0 : index
    %c0_3 = arith.constant 0 : index
    %c0_4 = arith.constant 0 : index
    %2 = vector.load %arg4[%c0_2, %c0_3, %c0_4] : memref<1x4x256xf32, #tpu.memory_space<vmem>>, vector<1x4x256xf32>
    %3 = vector.shape_cast %2 : vector<1x4x256xf32> to vector<4x256xf32>
    %c0_5 = arith.constant 0 : index
    %c0_6 = arith.constant 0 : index
    %c0_7 = arith.constant 0 : index
    %c0_8 = arith.constant 0 : index
    %4 = vector.load %arg2[%c0_5, %c0_6, %c0_7, %c0_8] : memref<2x2x4x1xf32, #tpu.memory_space<vmem>>, vector<2x2x4x1xf32>
    %5 = vector.extract_strided_slice %4 {offsets = [0, 0, 0, 0], sizes = [1, 1, 4, 1], strides = [1, 1, 1, 1]} : vector<2x2x4x1xf32> to vector<1x1x4x1xf32>
    %6 = vector.shape_cast %5 : vector<1x1x4x1xf32> to vector<4x1xf32>
    %7 = vector.broadcast %6 : vector<4x1xf32> to vector<4x256xf32>
    %8 = arith.mulf %7, %1 : vector<4x256xf32>
    %9 = vector.extract_strided_slice %4 {offsets = [0, 1, 0, 0], sizes = [1, 1, 4, 1], strides = [1, 1, 1, 1]} : vector<2x2x4x1xf32> to vector<1x1x4x1xf32>
    %10 = vector.shape_cast %9 : vector<1x1x4x1xf32> to vector<4x1xf32>
    %11 = vector.broadcast %10 : vector<4x1xf32> to vector<4x256xf32>
    %12 = arith.mulf %11, %3 : vector<4x256xf32>
    %13 = arith.addf %8, %12 : vector<4x256xf32>
    %c0_9 = arith.constant 0 : index
    %c0_10 = arith.constant 0 : index
    %c0_11 = arith.constant 0 : index
    %14 = vector.load %arg5[%c0_9, %c0_10, %c0_11] : memref<1x4x256xf32, #tpu.memory_space<vmem>>, vector<1x4x256xf32>
    %15 = vector.shape_cast %14 : vector<1x4x256xf32> to vector<4x256xf32>
    %16 = vector.shape_cast %13 : vector<4x256xf32> to vector<1x4x256xf32>
    tpu.vector_store %arg5[%c0_9, %c0_10, %c0_11], %16 {strides = array<i32>} : memref<1x4x256xf32, #tpu.memory_space<vmem>>, vector<1x4x256xf32>,
    %17 = vector.extract_strided_slice %4 {offsets = [1, 0, 0, 0], sizes = [1, 1, 4, 1], strides = [1, 1, 1, 1]} : vector<2x2x4x1xf32> to vector<1x1x4x1xf32>
    %18 = vector.shape_cast %17 : vector<1x1x4x1xf32> to vector<4x1xf32>
    %19 = vector.broadcast %18 : vector<4x1xf32> to vector<4x256xf32>
    %20 = arith.mulf %19, %1 : vector<4x256xf32>
    %21 = vector.extract_strided_slice %4 {offsets = [1, 1, 0, 0], sizes = [1, 1, 4, 1], strides = [1, 1, 1, 1]} : vector<2x2x4x1xf32> to vector<1x1x4x1xf32>
    %22 = vector.shape_cast %21 : vector<1x1x4x1xf32> to vector<4x1xf32>
    %23 = vector.broadcast %22 : vector<4x1xf32> to vector<4x256xf32>
    %24 = arith.mulf %23, %3 : vector<4x256xf32>
    %25 = arith.addf %20, %24 : vector<4x256xf32>
    %c0_12 = arith.constant 0 : index
    %c0_13 = arith.constant 0 : index
    %c0_14 = arith.constant 0 : index
    %26 = vector.load %arg6[%c0_12, %c0_13, %c0_14] : memref<1x4x256xf32, #tpu.memory_space<vmem>>, vector<1x4x256xf32>
    %27 = vector.shape_cast %26 : vector<1x4x256xf32> to vector<4x256xf32>
    %28 = vector.shape_cast %25 : vector<4x256xf32> to vector<1x4x256xf32>
    tpu.vector_store %arg6[%c0_12, %c0_13, %c0_14], %28 {strides = array<i32>} : memref<1x4x256xf32, #tpu.memory_space<vmem>>, vector<1x4x256xf32>,
    return
  }
  func.func @transform_0(%arg0: i32, %arg1: i32) -> (i32, i32, i32, i32) {
    %c0_i32 = arith.constant 0 : i32
    %c0_i32_0 = arith.constant 0 : i32
    %c0_i32_1 = arith.constant 0 : i32
    %c0_i32_2 = arith.constant 0 : i32
    %c0_i32_3 = arith.constant 0 : i32
    return %c0_i32, %c0_i32_0, %c0_i32_1, %c0_i32_2 : i32, i32, i32, i32
  }
  func.func @transform_1(%arg0: i32, %arg1: i32) -> (i32, i32, i32) {
    %c0_i32 = arith.constant 0 : i32
    %c0_i32_0 = arith.constant 0 : i32
    return %arg0, %c0_i32, %arg1 : i32, i32, i32
  }
  func.func @transform_2(%arg0: i32, %arg1: i32) -> (i32, i32, i32) {
    %c0_i32 = arith.constant 0 : i32
    %c0_i32_0 = arith.constant 0 : i32
    return %arg0, %c0_i32, %arg1 : i32, i32, i32
  }
  func.func @transform_3(%arg0: i32, %arg1: i32) -> (i32, i32, i32) {
    %c0_i32 = arith.constant 0 : i32
    %c0_i32_0 = arith.constant 0 : i32
    return %arg0, %c0_i32, %arg1 : i32, i32, i32
  }
  func.func @transform_4(%arg0: i32, %arg1: i32) -> (i32, i32, i32) {
    %c0_i32 = arith.constant 0 : i32
    %c0_i32_0 = arith.constant 0 : i32
    return %arg0, %c0_i32, %arg1 : i32, i32, i32
  }
}

</mosaic_0001>

<llo_original>
// kernel: _cross_stitch_jit.1
$region0: #{_cross_stitch_jit.1}
  #allocation0 [shape = 'u32[]', space=smem, size = 0x4, offset = 0x4, fixed_abs, tag = 'smem constant byte address 0x4 - core index']
  #allocation1 [shape = 'u32[144,128]{1,0:T(1,128)}', space=vmem, size = 0x12000, scoped, tag = 'internal scratch']
  %s0 = inlined_call_operand.vmem [shape: f32[2,2,4,1], index: 0, kind: input, shape index: {}]
  %s1 = inlined_call_operand.vmem [shape: f32[2,4,256], index: 1, kind: input, shape index: {}]
  %s2 = inlined_call_operand.hbm [shape: f32[2,4,256], index: 2, kind: input, shape index: {}]
  %s3 = inlined_call_operand.hbm [shape: f32[2,4,256], index: 3, kind: output, shape index: {0}]
  %s4 = inlined_call_operand.hbm [shape: f32[2,4,256], index: 4, kind: output, shape index: {1}]
  %5 = xla_tuple %s3, %s4
  %s6 = sld [smem:[#allocation0]]
  $region57: #{_cross_stitch_jit.1} parent=0
    _
  %s8 = ssub.s32 1, %s6
  %s9 = scalar_select 0, %s8, %s6
  $region1: #{_cross_stitch_jit.1} parent=0
    #allocation2 [shape = 'u8[8192]{0}', space=vmem, size = 0x2000, scoped, tag = 'input window, operand 2']
    #allocation3 [shape = 's32[2]{0}', space=sflag, size = 0x8, scoped, tag = 'scoped memory for _cross_stitch_jit.1']
    #allocation4 [shape = 's32[2]{0}', space=sflag, size = 0x8, scoped, tag = 'scoped memory for _cross_stitch_jit.1']
    #allocation5 [shape = 'u8[8192]{0}', space=vmem, size = 0x2000, scoped, tag = 'output window, operand 0']
    #allocation6 [shape = 'u8[8192]{0}', space=vmem, size = 0x2000, scoped, tag = 'output window, operand 1']
    #allocation7 [shape = 's32[2]{0}', space=sflag, size = 0x8, scoped, tag = 'scoped memory for _cross_stitch_jit.1']
    %10 = vsyncpa [#allocation3], 0
    %s11 = scalar_lea.sflag [#allocation3], 1
    %12 = vsyncpa %s11, 0
    %13 = vsyncpa [#allocation4], 0
    %s14 = scalar_lea.sflag [#allocation4], 1
    %15 = vsyncpa %s14, 0
    %16 = vsyncpa [#allocation7], 0
    %s17 = scalar_lea.sflag [#allocation7], 1
    %18 = vsyncpa %s17, 0
    loop: start=0, step=1, limit=4
    $region2: #{_cross_stitch_jit.1} parent=1 // loop_pre_header
      _
    $region3: #{_cross_stitch_jit.1} parent=1 // loop_header
      %s20 = sphi 0, %s24
      %p21 = scmp.ge.s32.totalorder %s20, 4
      %s27 = sphi 0, %s39
      %s28 = sphi 0, %s35
      %s29 = sphi 0, %s27
      %s30 = sphi 0, %s28
      %s31 = sphi 0, %s29
      %s32 = sphi 0, %s30
      %s40 = sphi 0, %s40
      %s42 = sphi 0, %s40
      %s43 = sphi 0, %s42
      %s57 = sphi 0, %s43
      %s65 = sphi 0, %s67
      %s68 = sphi 0, %s65
      %s69 = sphi 0, %s68
      %s85 = sphi 0, %s69
      %s93 = sphi 0, %s95
      %s96 = sphi 0, %s93
      %s97 = sphi 0, %s96
      %s113 = sphi 0, %s97
      %s121 = sphi 0, %s123
      %s124 = sphi 0, %s121
      %s125 = sphi 0, %s124
      %s141 = sphi 0, %s125
      %s149 = sphi 0, %s151
      %s152 = sphi 0, %s149
      %s153 = sphi 0, %s152
      %s169 = sphi 0, %s153
    $region4: #{_cross_stitch_jit.1} parent=1 // loop_header_branch
      %23 = sbr.rel (%p21) target = $region8
    $region5: #{_cross_stitch_jit.1} parent=1 // loop_body
      %s25 = ssub.s32 %s20, 1
      %s26 = ssub.s32 %s20, 2
      %s33 = sadd.s32 1, %s28
      %p34 = scmp.ge.s32.totalorder %s33, 1
      %s35 = scalar_select %p34, 0, %s33
      %s36 = sadd.s32 1, %s27
      %s37 = scalar_select %p34, %s36, %s27
      %p38 = scmp.ge.s32.totalorder %s37, 2
      %s39 = scalar_select %p38, 0, %s37
      %s41 = sadd.s32 %s40, 1
      %p44 = scmp.eq.s32.totalorder %s20, 1
      %p45 = scmp.ne.s32.totalorder %s40, %s42
      %p46 = scmp.eq.s32.totalorder %s20, 0
      %p47 = por %p45, %p46
      %p48 = scmp.ne.s32.totalorder %s40, %s42
      %p49 = scmp.eq.s32.totalorder %s25, 1
      %p50 = por %p48, %p49
      %p51 = scmp.ne.s32.totalorder %s42, %s43
      %p52 = scmp.eq.s32.totalorder %s25, 0
      %p53 = por %p51, %p52
      %p54 = scmp.ne.s32.totalorder %s42, %s43
      %p55 = scmp.eq.s32.totalorder %s26, 1
      %p56 = por %p54, %p55
      %p58 = scmp.ne.s32.totalorder %s43, %s57
      %p59 = scmp.eq.s32.totalorder %s26, 0
      %p60 = por %p58, %p59
      %s61 = ssub.s32 %s27, %s39
      %s62 = ssub.s32 %s28, %s35
      %s63 = sor.u32 %s61, %s62
      %p64 = scmp.eq.s32.totalorder %s63, 0
      %s66 = sadd.s32 %s65, 1
      %s67 = scalar_select %p64, %s65, %s66
      %p70 = pneg %p64
      %p71 = scmp.eq.s32.totalorder %s20, 1
      %p72 = por %p70, %p71
      %p73 = scmp.ne.s32.totalorder %s65, %s68
      %p74 = scmp.eq.s32.totalorder %s20, 0
      %p75 = por %p73, %p74
      %p76 = scmp.ne.s32.totalorder %s65, %s68
      %p77 = scmp.eq.s32.totalorder %s25, 1
      %p78 = por %p76, %p77
      %p79 = scmp.ne.s32.totalorder %s68, %s69
      %p80 = scmp.eq.s32.totalorder %s25, 0
      %p81 = por %p79, %p80
      %p82 = scmp.ne.s32.totalorder %s68, %s69
      %p83 = scmp.eq.s32.totalorder %s26, 1
      %p84 = por %p82, %p83
      %p86 = scmp.ne.s32.totalorder %s69, %s85
      %p87 = scmp.eq.s32.totalorder %s26, 0
      %p88 = por %p86, %p87
      %s89 = ssub.s32 %s27, %s39
      %s90 = ssub.s32 %s28, %s35
      %s91 = sor.u32 %s89, %s90
      %p92 = scmp.eq.s32.totalorder %s91, 0
      %s94 = sadd.s32 %s93, 1
      %s95 = scalar_select %p92, %s93, %s94
      %p98 = pneg %p92
      %p99 = scmp.eq.s32.totalorder %s20, 1
      %p100 = por %p98, %p99
      %p101 = scmp.ne.s32.totalorder %s93, %s96
      %p102 = scmp.eq.s32.totalorder %s20, 0
      %p103 = por %p101, %p102
      %p104 = scmp.ne.s32.totalorder %s93, %s96
      %p105 = scmp.eq.s32.totalorder %s25, 1
      %p106 = por %p104, %p105
      %p107 = scmp.ne.s32.totalorder %s96, %s97
      %p108 = scmp.eq.s32.totalorder %s25, 0
      %p109 = por %p107, %p108
      %p110 = scmp.ne.s32.totalorder %s96, %s97
      %p111 = scmp.eq.s32.totalorder %s26, 1
      %p112 = por %p110, %p111
      %p114 = scmp.ne.s32.totalorder %s97, %s113
      %p115 = scmp.eq.s32.totalorder %s26, 0
      %p116 = por %p114, %p115
      %s117 = ssub.s32 %s27, %s39
      %s118 = ssub.s32 %s28, %s35
      %s119 = sor.u32 %s117, %s118
      %p120 = scmp.eq.s32.totalorder %s119, 0
      %s122 = sadd.s32 %s121, 1
      %s123 = scalar_select %p120, %s121, %s122
      %p126 = pneg %p120
      %p127 = scmp.eq.s32.totalorder %s20, 1
      %p128 = por %p126, %p127
      %p129 = scmp.ne.s32.totalorder %s121, %s124
      %p130 = scmp.eq.s32.totalorder %s20, 0
      %p131 = por %p129, %p130
      %p132 = scmp.ne.s32.totalorder %s121, %s124
      %p133 = scmp.eq.s32.totalorder %s25, 1
      %p134 = por %p132, %p133
      %p135 = scmp.ne.s32.totalorder %s124, %s125
      %p136 = scmp.eq.s32.totalorder %s25, 0
      %p137 = por %p135, %p136
      %p138 = scmp.ne.s32.totalorder %s124, %s125
      %p139 = scmp.eq.s32.totalorder %s26, 1
      %p140 = por %p138, %p139
      %p142 = scmp.ne.s32.totalorder %s125, %s141
      %p143 = scmp.eq.s32.totalorder %s26, 0
      %p144 = por %p142, %p143
      %s145 = ssub.s32 %s27, %s39
      %s146 = ssub.s32 %s28, %s35
      %s147 = sor.u32 %s145, %s146
      %p148 = scmp.eq.s32.totalorder %s147, 0
      %s150 = sadd.s32 %s149, 1
      %s151 = scalar_select %p148, %s149, %s150
      %p154 = pneg %p148
      %p155 = scmp.eq.s32.totalorder %s20, 1
      %p156 = por %p154, %p155
      %p157 = scmp.ne.s32.totalorder %s149, %s152
      %p158 = scmp.eq.s32.totalorder %s20, 0
      %p159 = por %p157, %p158
      %p160 = scmp.ne.s32.totalorder %s149, %s152
      %p161 = scmp.eq.s32.totalorder %s25, 1
      %p162 = por %p160, %p161
      %p163 = scmp.ne.s32.totalorder %s152, %s153
      %p164 = scmp.eq.s32.totalorder %s25, 0
      %p165 = por %p163, %p164
      %p166 = scmp.ne.s32.totalorder %s152, %s153
      %p167 = scmp.eq.s32.totalorder %s26, 1
      %p168 = por %p166, %p167
      %p170 = scmp.ne.s32.totalorder %s153, %s169
      %p171 = scmp.eq.s32.totalorder %s26, 0
      %p172 = por %p170, %p171
      %p173 = scmp.le.s32.totalorder 1, %s20
      %p174 = scmp.lt.s32.totalorder %s20, 3
      %p175 = pnand %p173, %p174
      %p176 = pneg %p175
      // Predicated region
      $region9: #{_cross_stitch_jit.1} parent=5 // pred_check
        _
      $region10: #{_cross_stitch_jit.1} parent=5 // pred_check_branch
        %178 = sbr.rel (%p175) target = $region12
      $region11: #{_cross_stitch_jit.1} parent=5 // pred_region
        %s179 = ssub.s32 %s20, 1
        // Predicated region
        $region13: #{_cross_stitch_jit.1} parent=11 // pred_check
          %p180 = pneg %p53
        $region14: #{_cross_stitch_jit.1} parent=11 // pred_check_branch
          %182 = sbr.rel (%p180) target = $region16
        $region15: #{_cross_stitch_jit.1} parent=11 // pred_region
          _
        $region16: #{_cross_stitch_jit.1} parent=11 // pred_fallthru
          _
      $region12: #{_cross_stitch_jit.1} parent=5 // pred_fallthru
        _
      %p183 = scmp.lt.s32.totalorder %s20, 2
      // Predicated region
      $region17: #{_cross_stitch_jit.1} parent=5 // pred_check
        %p184 = pneg %p183
      $region18: #{_cross_stitch_jit.1} parent=5 // pred_check_branch
        %186 = sbr.rel (%p184) target = $region20
      $region19: #{_cross_stitch_jit.1} parent=5 // pred_region
        // Predicated region
        $region21: #{_cross_stitch_jit.1} parent=19 // pred_check
          %p187 = pneg %p75
        $region22: #{_cross_stitch_jit.1} parent=19 // pred_check_branch
          %189 = sbr.rel (%p187) target = $region24
        $region23: #{_cross_stitch_jit.1} parent=19 // pred_region
          %s190 = smul.u32 2, %s28
          %p191 = scmp.lt.s32.totalorder %s27, 1
          %s192 = scalar_select %p191, %s27, 1
          %p193 = scmp.lt.s32.totalorder %s190, 1
          %s194 = scalar_select %p193, %s190, 1
          %s195 = smul.addr %s192, 2
          %s196 = sadd.s32 %s194, %s195
          %s197 = smul.addr %s196, 4
          %s198 = scalar_lea.vmem %s1, %s197
          %s199 = smul.u32 2, %s28
        $region24: #{_cross_stitch_jit.1} parent=19 // pred_fallthru
          _
        // Predicated region
        $region25: #{_cross_stitch_jit.1} parent=19 // pred_check
          %p200 = pneg %p103
        $region26: #{_cross_stitch_jit.1} parent=19 // pred_check_branch
          %202 = sbr.rel (%p200) target = $region28
        $region27: #{_cross_stitch_jit.1} parent=19 // pred_region
          %s203 = sand.u32 %s93, 1
          %s204 = scalar_lea.sflag [#allocation3], %s203
          %s205 = sand.u32 %s93, 1
          %s206 = smul.addr %s205, 8
          %s207 = scalar_lea.vmem [#allocation2], %s206
          %s208 = smul.u32 2, %s28
          %s210 = ssub.s32 128, 128
          %211 = vsyncadd %s204, %s210
          %s212 = smul.addr %s27, 2
          %s213 = sadd.s32 %s208, %s212
          %s214 = smul.addr %s213, 64
          %s215 = scalar_lea.hbm %s2, %s214
          %s217 = sshll.u32 %s207, 4
          %s218 = int_to_ptr.vmem [resolvable:$true] %s217
          %220 = dma.hbm_to_vmem [thread:$0]  %s215, 128, %s218, %s204
        $region28: #{_cross_stitch_jit.1} parent=19 // pred_fallthru
          _
      $region20: #{_cross_stitch_jit.1} parent=5 // pred_fallthru
        _
      %p221 = scmp.le.s32.totalorder 1, %s20
      %p222 = scmp.lt.s32.totalorder %s20, 3
      %p223 = pnand %p221, %p222
      %p224 = pneg %p223
      // Predicated region
      $region29: #{_cross_stitch_jit.1} parent=5 // pred_check
        _
      $region30: #{_cross_stitch_jit.1} parent=5 // pred_check_branch
        %226 = sbr.rel (%p223) target = $region32
      $region31: #{_cross_stitch_jit.1} parent=5 // pred_region
        %s227 = ssub.s32 %s20, 1
        %s228 = sand.u32 %s96, 1
        %s229 = scalar_lea.sflag [#allocation3], %s228
        %s230 = sand.u32 %s96, 1
        %s231 = smul.addr %s230, 8
        %s232 = scalar_lea.vmem [#allocation2], %s231
        // Predicated region
        $region33: #{_cross_stitch_jit.1} parent=31 // pred_check
          %p233 = pneg %p109
        $region34: #{_cross_stitch_jit.1} parent=31 // pred_check_branch
          %235 = sbr.rel (%p233) target = $region36
        $region35: #{_cross_stitch_jit.1} parent=31 // pred_region
          %236 = dma.done %s229, 128
        $region36: #{_cross_stitch_jit.1} parent=31 // pred_fallthru
          _
        %p237 = pneg %p53
        %p238 = pneg %p50
        %s239 = smul.u32 2, %s30
        %p240 = scmp.lt.s32.totalorder %s29, 1
        %s241 = scalar_select %p240, %s29, 1
        %p242 = scmp.lt.s32.totalorder %s239, 1
        %s243 = scalar_select %p242, %s239, 1
        %s244 = smul.addr %s241, 2
        %s245 = sadd.s32 %s243, %s244
        %s246 = smul.addr %s245, 4
        %s247 = scalar_lea.vmem %s1, %s246
        %p248 = pneg %p81
        %p249 = pneg %p78
        %s250 = sand.u32 %s96, 1
        %s251 = scalar_lea.sflag [#allocation3], %s250
        %s252 = sand.u32 %s96, 1
        %s253 = smul.addr %s252, 8
        %s254 = scalar_lea.vmem [#allocation2], %s253
        %p255 = pneg %p109
        %p256 = pneg %p106
        %p257 = pneg %p137
        %p258 = pneg %p134
        %s259 = sand.u32 %s124, 1
        %s260 = scalar_lea.sflag [#allocation4], %s259
        %s261 = sand.u32 %s124, 1
        %s262 = smul.addr %s261, 8
        %s263 = scalar_lea.vmem [#allocation5], %s262
        %p264 = pneg %p165
        %p265 = pneg %p162
        %s266 = sand.u32 %s152, 1
        %s267 = scalar_lea.sflag [#allocation7], %s266
        %s268 = sand.u32 %s152, 1
        %s269 = smul.addr %s268, 8
        %s270 = scalar_lea.vmem [#allocation6], %s269
        %s271 = smul.u32 2, %s30
        %p272 = scmp.lt.s32.totalorder %s29, 1
        %s273 = scalar_select %p272, %s29, 1
        %p274 = scmp.lt.s32.totalorder %s271, 1
        %s275 = scalar_select %p274, %s271, 1
        %s276 = smul.addr %s273, 2
        %s277 = sadd.s32 %s275, %s276
        %s278 = smul.addr %s277, 4
        %s279 = scalar_lea.vmem %s1, %s278
        %s280 = smul.u32 2, %s30
        %s281 = smul.u32 2, %s30
        %s282 = smul.u32 2, %s30
        %s283 = smul.u32 2, %s30
        %v284 = vld [vmem:[%s279] sm:$0xff]
        %v285 = vld [vmem:[%s232] sm:$0xff]
        %v286 = vld [vmem:[%s0] sm:$0xf]
        %v287 = vld [vmem:[%s0 + $0x4] sm:$0xf]
        %v288 = vld [vmem:[%s0 + $0x8] sm:$0xf]
        %v289 = vld [vmem:[%s0 + $0xc] sm:$0xf]
        %291 = vset.pattern.permute.xlu0 0
        %292 = vperm.xlu0 %291, %v286
        %v293 = vpop.permute.xlu0 %292
        %v296 = vcombine.high %v284, %v284
        %v298 = vmul.f32 %v293, %v284
        %v299 = vmul.f32 %v293, %v296
        %301 = vset.pattern.permute.xlu0 0
        %302 = vperm.xlu0 %301, %v287
        %v303 = vpop.permute.xlu0 %302
        %v306 = vcombine.high %v285, %v285
        %v308 = vmul.f32 %v303, %v285
        %v309 = vmul.f32 %v303, %v306
        %v310 = vadd.f32 %v298, %v308
        %v311 = vadd.f32 %v299, %v309
        %v314 = vcombine.low %v310, %v311
        %316 = vst [vmem:[%s263] sm:$0xff] %v314
        %318 = vset.pattern.permute.xlu0 0
        %319 = vperm.xlu0 %318, %v288
        %v320 = vpop.permute.xlu0 %319
        %v322 = vmul.f32 %v320, %v284
        %v323 = vmul.f32 %v320, %v296
        %325 = vset.pattern.permute.xlu0 0
        %326 = vperm.xlu0 %325, %v289
        %v327 = vpop.permute.xlu0 %326
        %v329 = vmul.f32 %v327, %v285
        %v330 = vmul.f32 %v327, %v306
        %v331 = vadd.f32 %v322, %v329
        %v332 = vadd.f32 %v323, %v330
        %v335 = vcombine.low %v331, %v332
        %337 = vst [vmem:[%s270] sm:$0xff] %v335
        %s338 = sand.u32 %s124, 1
        %s339 = scalar_lea.sflag [#allocation4], %s338
        %s340 = sand.u32 %s124, 1
        %s341 = smul.addr %s340, 8
        %s342 = scalar_lea.vmem [#allocation5], %s341
        %s343 = sand.u32 %s152, 1
        %s344 = scalar_lea.sflag [#allocation7], %s343
        %s345 = sand.u32 %s152, 1
        %s346 = smul.addr %s345, 8
        %s347 = scalar_lea.vmem [#allocation6], %s346
        // Predicated region
        $region37: #{_cross_stitch_jit.1} parent=31 // pred_check
          %p348 = pneg %p134
        $region38: #{_cross_stitch_jit.1} parent=31 // pred_check_branch
          %350 = sbr.rel (%p348) target = $region40
        $region39: #{_cross_stitch_jit.1} parent=31 // pred_region
          %s351 = smul.u32 2, %s30
          %s353 = ssub.s32 128, 128
          %354 = vsyncadd %s339, %s353
          %s355 = smul.addr %s29, 2
          %s356 = sadd.s32 %s351, %s355
          %s357 = smul.addr %s356, 64
          %s358 = scalar_lea.hbm %s3, %s357
          %s360 = sshll.u32 %s342, 4
          %s361 = int_to_ptr.vmem [resolvable:$true] %s360
          %363 = dma.vmem_to_hbm [thread:$0]  %s361, 128, %s358, %s339
        $region40: #{_cross_stitch_jit.1} parent=31 // pred_fallthru
          _
        // Predicated region
        $region41: #{_cross_stitch_jit.1} parent=31 // pred_check
          %p364 = pneg %p162
        $region42: #{_cross_stitch_jit.1} parent=31 // pred_check_branch
          %366 = sbr.rel (%p364) target = $region44
        $region43: #{_cross_stitch_jit.1} parent=31 // pred_region
          %s367 = smul.u32 2, %s30
          %s369 = ssub.s32 128, 128
          %370 = vsyncadd %s344, %s369
          %s371 = smul.addr %s29, 2
          %s372 = sadd.s32 %s367, %s371
          %s373 = smul.addr %s372, 64
          %s374 = scalar_lea.hbm %s4, %s373
          %s376 = sshll.u32 %s347, 4
          %s377 = int_to_ptr.vmem [resolvable:$true] %s376
          %379 = dma.vmem_to_hbm [thread:$0]  %s377, 128, %s374, %s344
        $region44: #{_cross_stitch_jit.1} parent=31 // pred_fallthru
          _
      $region32: #{_cross_stitch_jit.1} parent=5 // pred_fallthru
        _
      %p380 = scmp.le.s32.totalorder 2, %s20
      // Predicated region
      $region45: #{_cross_stitch_jit.1} parent=5 // pred_check
        %p381 = pneg %p380
      $region46: #{_cross_stitch_jit.1} parent=5 // pred_check_branch
        %383 = sbr.rel (%p381) target = $region48
      $region47: #{_cross_stitch_jit.1} parent=5 // pred_region
        %s384 = ssub.s32 %s20, 2
        // Predicated region
        $region49: #{_cross_stitch_jit.1} parent=47 // pred_check
          %p385 = pneg %p140
        $region50: #{_cross_stitch_jit.1} parent=47 // pred_check_branch
          %387 = sbr.rel (%p385) target = $region52
        $region51: #{_cross_stitch_jit.1} parent=47 // pred_region
          %s388 = sand.u32 %s125, 1
          %s389 = scalar_lea.sflag [#allocation4], %s388
          %s390 = sand.u32 %s125, 1
          %s391 = smul.addr %s390, 8
          %s392 = scalar_lea.vmem [#allocation5], %s391
          %393 = dma.done %s389, 128
        $region52: #{_cross_stitch_jit.1} parent=47 // pred_fallthru
          _
        // Predicated region
        $region53: #{_cross_stitch_jit.1} parent=47 // pred_check
          %p394 = pneg %p168
        $region54: #{_cross_stitch_jit.1} parent=47 // pred_check_branch
          %396 = sbr.rel (%p394) target = $region56
        $region55: #{_cross_stitch_jit.1} parent=47 // pred_region
          %s397 = sand.u32 %s153, 1
          %s398 = scalar_lea.sflag [#allocation7], %s397
          %s399 = sand.u32 %s153, 1
          %s400 = smul.addr %s399, 8
          %s401 = scalar_lea.vmem [#allocation6], %s400
          %402 = dma.done %s398, 128
        $region56: #{_cross_stitch_jit.1} parent=47 // pred_fallthru
          _
      $region48: #{_cross_stitch_jit.1} parent=5 // pred_fallthru
        _
    $region6: #{_cross_stitch_jit.1} parent=1 // loop_footer
      %s24 = sadd.s32 1, %s20
    $region7: #{_cross_stitch_jit.1} parent=1 // loop_footer_branch
      %19 = sbr.rel target = $region3
    $region8: #{_cross_stitch_jit.1} parent=1 // loop_exit
      _
    %403 = vsyncpa [#allocation3], 1
    %s404 = scalar_lea.sflag [#allocation3], 1
    %405 = vsyncpa %s404, 1
    %406 = vsyncpa [#allocation4], 1
    %s407 = scalar_lea.sflag [#allocation4], 1
    %408 = vsyncpa %s407, 1
    %409 = vsyncpa [#allocation7], 1
    %s410 = scalar_lea.sflag [#allocation7], 1
    %411 = vsyncpa %s410, 1

</llo_original>
